<compile_context>
chip_gen: v7x
topology: tpu7x:2x2x1
jax: 0.10.0
libtpu: 0.0.40
codegen_flags: <defaults>
</compile_context>

<pallas_src>
import jax
import jax.numpy as jnp
from jax.experimental import pallas as pl
from jax.experimental.pallas import tpu as pltpu


def _linear_kernel(x_ref, w_ref, b_ref, o_ref):
    # x_ref: (TB, F) VMEM     w_ref: (1, F) VMEM (resident across the grid)
    # b_ref: (1,) f32 SMEM    o_ref: (1, TB) f32 VMEM (lane-dense: batch on lanes)
    x = x_ref[...].astype(jnp.float32)
    w = w_ref[...].astype(jnp.float32)            # (1, F) broadcasts over rows
    y = jnp.sum(x * w, axis=-1)                   # VPU mul + XLU lane reduce -> (TB,)
    o_ref[...] = (y + b_ref[0])[None, :].astype(o_ref.dtype)


def _round_up(v, m):
    return ((v + m - 1) // m) * m


def linear_net_forward(x, weight, bias, *, target_block_bytes=4 * 1024 * 1024):
    """y = x @ weight.T + bias  (nn.Linear(F, 1)): weight (1, F), bias (1,)."""
    B, F = x.shape
    out_dtype = x.dtype
    itemsize = jnp.dtype(x.dtype).itemsize
    # Sublane packing: 8 rows/vreg for 4-byte, 16 for 2-byte, 32 for 1-byte dtypes.
    row_align = max(8, 32 // itemsize)

    # Row tile sized by bytes (kernel is deeply mem-bound, ~0.5 flop/byte):
    # big enough to amortize per-step overhead, never larger than the (aligned)
    # batch, never smaller than one vreg of sublanes.
    # TODO(synk): for very large F (tens of thousands), add a second
    # ("arbitrary") grid axis over F with a small VMEM accumulator so each DMA
    # block stays in the 2-4 MiB sweet spot instead of shrinking tb.
    bytes_per_row = max(F * itemsize, 1)
    tb = max(target_block_bytes // bytes_per_row, 1)
    tb = max((tb // row_align) * row_align, row_align)
    tb = min(tb, _round_up(B, row_align))
    num_tiles = pl.cdiv(B, tb)

    w = weight.reshape(1, F)
    b = bias.reshape(1).astype(jnp.float32)

    # VMEM actually needed (x and out blocks are double-buffered); request a
    # comfortable margin, clamped so it fits every generation.
    x_block_bytes = tb * F * itemsize
    out_block_bytes = tb * 4
    w_bytes = F * jnp.dtype(w.dtype).itemsize
    need = 2 * (x_block_bytes + out_block_bytes) + w_bytes + (1 << 20)
    vmem_limit = int(min(max(2 * need, 16 * 1024 * 1024), 32 * 1024 * 1024))

    cost = pl.CostEstimate(
        flops=2 * B * F,
        transcendentals=0,
        bytes_accessed=B * F * itemsize + w_bytes + 4 + B * 4,
    )

    out = pl.pallas_call(
        _linear_kernel,
        out_shape=jax.ShapeDtypeStruct((num_tiles, tb), jnp.float32),
        grid=(num_tiles,),
        in_specs=[
            # x: pipelined (tb, F) row tiles. The last block may be ragged
            # (reads past B are undefined) -- safe: rows are independent and
            # the corresponding output positions are sliced away below.
            pl.BlockSpec((tb, F), lambda i: (i, 0)),
            # weight: tiny, kept resident in VMEM across the whole grid.
            pl.BlockSpec((1, F), lambda i: (0, 0)),
            # bias: scalar in SMEM.
            pl.BlockSpec(memory_space=pltpu.MemorySpace.SMEM),
        ],
        out_specs=pl.BlockSpec((1, tb), lambda i: (i, 0)),   # lane-dense rows
        compiler_params=pltpu.CompilerParams(
            # TODO(synk): on v7x, confirm both TensorCores are busy under
            # "parallel"; switch to pltpu.CORE_PARALLEL if only one TC runs.
            dimension_semantics=("parallel",),
            vmem_limit_bytes=vmem_limit,
        ),
        cost_estimate=cost,
    )(x, w, b)

    # Back to the PyTorch Linear output layout (B, 1), in the input dtype.
    return out.reshape(-1)[:B].reshape(B, 1).astype(out_dtype)


if __name__ == "__main__":
    key = jax.random.PRNGKey(0)
    kx, kw, kb, kx2, kx3 = jax.random.split(key, 5)

    # Small shapes consistent with LinearNet: batch=8, n_features=32.
    n_features = 32
    batch = 8
    bound = 1.0 / jnp.sqrt(jnp.float32(n_features))
    weight = jax.random.uniform(kw, (1, n_features), jnp.float32, -bound, bound)
    bias = jax.random.uniform(kb, (1,), jnp.float32, -bound, bound)
    x = jax.random.normal(kx, (batch, n_features), jnp.float32)

    y = jax.block_until_ready(linear_net_forward(x, weight, bias))
    y_ref = x @ weight.T + bias
    assert y.shape == (batch, 1)
    assert jnp.allclose(y, y_ref, atol=1e-5, rtol=1e-5)

    # Ragged-batch path (B not a multiple of the tile) with NO wrapper-side pad.
    batch2, feat2 = 500, 128
    x2 = jax.random.normal(kx2, (batch2, feat2), jnp.float32)
    w2 = jax.random.uniform(kw, (1, feat2), jnp.float32, -0.1, 0.1)
    b2 = jax.random.uniform(kb, (1,), jnp.float32, -0.1, 0.1)
    y2 = jax.block_until_ready(linear_net_forward(x2, w2, b2))
    assert y2.shape == (batch2, 1)
    assert jnp.allclose(y2, x2 @ w2.T + b2, atol=1e-4, rtol=1e-4)

    # bf16 activations/weights (halves HBM traffic; accumulation stays f32).
    x3 = jax.random.normal(kx3, (300, 64), jnp.float32)
    w3 = jax.random.uniform(kw, (1, 64), jnp.float32, -0.1, 0.1)
    b3 = jax.random.uniform(kb, (1,), jnp.float32, -0.1, 0.1)
    x3b = x3.astype(jnp.bfloat16)
    w3b = w3.astype(jnp.bfloat16)
    y3 = jax.block_until_ready(linear_net_forward(x3b, w3b, b3))
    y3_ref = x3b.astype(jnp.float32) @ w3b.astype(jnp.float32).T + b3
    assert y3.shape == (300, 1)
    assert jnp.allclose(y3.astype(jnp.float32), y3_ref, atol=2e-2, rtol=2e-2)

    print("KERNEL_OK")
</pallas_src>

<mosaic_0001>
module attributes {stable_mosaic.version = 11 : i64} {
  func.func @_linear_kernel(%arg0: i32, %arg1: memref<8x32xf32, #tpu.memory_space<vmem>>, %arg2: memref<1x32xf32, #tpu.memory_space<vmem>>, %arg3: memref<1xf32, #tpu.memory_space<smem>>, %arg4: memref<1x8xf32, #tpu.memory_space<vmem>>) attributes {dimension_semantics = [#tpu.dimension_semantics<parallel>], iteration_bounds = array<i64: 1>, scalar_prefetch = 0 : i64, scratch_operands = 0 : i64, tpu.core_type = #tpu.core_type<tc>, window_params = [{transform_indices = @transform_0, window_bounds = array<i64: 8, 32>}, {pipeline_mode = #tpu.pipeline_mode<synchronous>, transform_indices = @transform_1, window_bounds = array<i64: 1, 32>}, {transform_indices = @transform_2, window_bounds = array<i64: 1>}, {transform_indices = @transform_3, window_bounds = array<i64: 1, 8>}]} {
    %c0 = arith.constant 0 : index
    %c0_0 = arith.constant 0 : index
    %0 = vector.load %arg1[%c0, %c0_0] : memref<8x32xf32, #tpu.memory_space<vmem>>, vector<8x32xf32>
    %c0_1 = arith.constant 0 : index
    %c0_2 = arith.constant 0 : index
    %1 = vector.load %arg2[%c0_1, %c0_2] : memref<1x32xf32, #tpu.memory_space<vmem>>, vector<1x32xf32>
    %2 = vector.broadcast %1 : vector<1x32xf32> to vector<8x32xf32>
    %3 = arith.mulf %0, %2 : vector<8x32xf32>
    %cst = arith.constant dense<0.000000e+00> : vector<8xf32>
    %4 = vector.multi_reduction <add>, %3, %cst [1] : vector<8x32xf32> to vector<8xf32>
    %c0_3 = arith.constant 0 : index
    %5 = memref.load %arg3[%c0_3] : memref<1xf32, #tpu.memory_space<smem>>
    %6 = vector.broadcast %5 : f32 to vector<8xf32>
    %7 = arith.addf %4, %6 : vector<8xf32>
    %8 = vector.shape_cast %7 : vector<8xf32> to vector<1x8xf32>
    %c0_4 = arith.constant 0 : index
    %c0_5 = arith.constant 0 : index
    %9 = vector.load %arg4[%c0_4, %c0_5] : memref<1x8xf32, #tpu.memory_space<vmem>>, vector<1x8xf32>
    tpu.vector_store %arg4[%c0_4, %c0_5], %8 {strides = array<i32>} : memref<1x8xf32, #tpu.memory_space<vmem>>, vector<1x8xf32>,
    return
  }
  func.func @transform_0(%arg0: i32) -> (i32, i32) {
    %c0_i32 = arith.constant 0 : i32
    %c0_i32_0 = arith.constant 0 : i32
    return %arg0, %c0_i32 : i32, i32
  }
  func.func @transform_1(%arg0: i32) -> (i32, i32) {
    %c0_i32 = arith.constant 0 : i32
    %c0_i32_0 = arith.constant 0 : i32
    %c0_i32_1 = arith.constant 0 : i32
    return %c0_i32, %c0_i32_0 : i32, i32
  }
  func.func @transform_2(%arg0: i32) -> i32 {
    %c0_i32 = arith.constant 0 : i32
    %c0_i32_0 = arith.constant 0 : i32
    return %c0_i32 : i32
  }
  func.func @transform_3(%arg0: i32) -> (i32, i32) {
    %c0_i32 = arith.constant 0 : i32
    %c0_i32_0 = arith.constant 0 : i32
    return %arg0, %c0_i32 : i32, i32
  }
}

</mosaic_0001>

<llo_original>
// kernel: tpu_custom_call.1
$region0: #{tpu_custom_call.1}
  #allocation0 [shape = 'u32[]', space=smem, size = 0x4, offset = 0x4, fixed_abs, tag = 'smem constant byte address 0x4 - core index']
  #allocation1 [shape = 'u32[144,128]{1,0:T(1,128)}', space=vmem, size = 0x12000, scoped, tag = 'internal scratch']
  #allocation2 [shape = 'f32[1]{0:T(128)S(6)}', space=smem, size = 0x200, scoped, tag = 'scoped memory for tpu_custom_call.1']
  %s0 = inlined_call_operand.hbm [shape: f32[8,32], index: 0, kind: input, shape index: {}]
  %s1 = inlined_call_operand.vmem [shape: f32[1,32], index: 1, kind: input, shape index: {}]
  %s2 = inlined_call_operand.<no memory space> [shape: f32[1], index: 2, kind: input, shape index: {}]
  %s3 = inlined_call_operand.hbm [shape: f32[1,8], index: 3, kind: output, shape index: {}]
  %s4 = sld [smem:[#allocation0]]
  $region26: #{tpu_custom_call.1} parent=0
    _
  %s6 = ssub.s32 1, %s4
  %s7 = scalar_select 0, %s6, %s4
  %8 = sst [smem:[#allocation2]] %s2
  $region1: #{tpu_custom_call.1} parent=0
    #allocation3 [shape = 'u8[4096]{0}', space=vmem, size = 0x1000, scoped, tag = 'input window, operand 0, single buffered']
    #allocation4 [shape = 's32[1]{0}', space=sflag, size = 0x4, scoped, tag = 'scoped memory for tpu_custom_call.1']
    #allocation5 [shape = 's32[1]{0}', space=sflag, size = 0x4, scoped, tag = 'scoped memory for tpu_custom_call.1']
    #allocation6 [shape = 'u8[512]{0}', space=vmem, size = 0x400, scoped, tag = 'output window, operand 0, single buffered']
    %9 = vsyncpa [#allocation4], 0
    %10 = vsyncpa [#allocation5], 0
    // Predicated region
    $region2: #{tpu_custom_call.1} parent=1 // pred_check
      _
    $region3: #{tpu_custom_call.1} parent=1 // pred_check_branch
      %12 = sbr.rel (0) target = $region5
    $region4: #{tpu_custom_call.1} parent=1 // pred_region
      %s14 = ssub.s32 128, 128
      %15 = vsyncadd [#allocation4], %s14
      %s17 = sshll.u32 [#allocation3], 4
      %s18 = int_to_ptr.vmem [resolvable:$true] %s17
      %20 = dma.hbm_to_vmem [thread:$0]  %s0, 128, %s18, [#allocation4]
    $region5: #{tpu_custom_call.1} parent=1 // pred_fallthru
      _
    // Predicated region
    $region6: #{tpu_custom_call.1} parent=1 // pred_check
      _
    $region7: #{tpu_custom_call.1} parent=1 // pred_check_branch
      %22 = sbr.rel (0) target = $region9
    $region8: #{tpu_custom_call.1} parent=1 // pred_region
      _
    $region9: #{tpu_custom_call.1} parent=1 // pred_fallthru
      _
    // Predicated region
    $region10: #{tpu_custom_call.1} parent=1 // pred_check
      _
    $region11: #{tpu_custom_call.1} parent=1 // pred_check_branch
      %24 = sbr.rel (0) target = $region13
    $region12: #{tpu_custom_call.1} parent=1 // pred_region
      _
    $region13: #{tpu_custom_call.1} parent=1 // pred_fallthru
      _
    // Predicated region
    $region14: #{tpu_custom_call.1} parent=1 // pred_check
      _
    $region15: #{tpu_custom_call.1} parent=1 // pred_check_branch
      %26 = sbr.rel (0) target = $region17
    $region16: #{tpu_custom_call.1} parent=1 // pred_region
      %27 = dma.done [#allocation4], 128
    $region17: #{tpu_custom_call.1} parent=1 // pred_fallthru
      _
    %v28 = vld [vmem:[#allocation3] sm:$0xff]
    %v29 = vld [vmem:[%s1] sm:$0x1]
    %v31 = vlaneseq
    %v32 = vshrl.u32 %v31, 7
    %v33 = vsub.s32 0, %v32
    %v34 = vrot.slane %v29, %v33
    %v36 = vmul.f32 %v28, %v34
    %vm37 = vcmask 261120
    %v38 = vsel %vm37, %v36, 0.0
    %39 = vadd.xlane.f32.xlu0 %v38
    %v40 = vpop.xlane.xlu0 %39
    %s41 = sld [smem:[#allocation2]]
    %v42 = vstv %s41
    %v43 = vadd.f32 %v40, %v42
    %v45 = vlaneseq
    %v46 = vand.u32 %v45, 127
    %v47 = vlaneseq
    %v48 = vshrl.u32 %v47, 7
    %v49 = vsub.s32 %v46, %v48
    %v50 = vrot.slane %v43, %v49
    %vm52 = vcmask 57344
    %53 = vst.msk [vmem:[#allocation6] sm:$0x1] %vm52, %v50
    // Predicated region
    $region18: #{tpu_custom_call.1} parent=1 // pred_check
      _
    $region19: #{tpu_custom_call.1} parent=1 // pred_check_branch
      %55 = sbr.rel (0) target = $region21
    $region20: #{tpu_custom_call.1} parent=1 // pred_region
      %s57 = ssub.s32 16, 16
      %58 = vsyncadd [#allocation5], %s57
      %s60 = sshll.u32 [#allocation6], 4
      %s61 = int_to_ptr.vmem [resolvable:$true] %s60
      %63 = dma.vmem_to_hbm [thread:$0]  %s61, 16, %s3, [#allocation5]
    $region21: #{tpu_custom_call.1} parent=1 // pred_fallthru
      _
    // Predicated region
    $region22: #{tpu_custom_call.1} parent=1 // pred_check
      _
    $region23: #{tpu_custom_call.1} parent=1 // pred_check_branch
      %65 = sbr.rel (0) target = $region25
    $region24: #{tpu_custom_call.1} parent=1 // pred_region
      %66 = dma.done [#allocation5], 16
    $region25: #{tpu_custom_call.1} parent=1 // pred_fallthru
      _
    %67 = vsyncpa [#allocation4], 1
    %68 = vsyncpa [#allocation5], 1

</llo_original>
